<compile_context>
chip_gen: v5e
topology: v5e:2x2
jax: 0.10.0
libtpu: 0.0.40
codegen_flags: <defaults>
</compile_context>

<pallas_src>
import functools

import jax
import jax.numpy as jnp
from jax.experimental import pallas as pl
from jax.experimental.pallas import tpu as pltpu


# ----------------------------------------------------------------------------
# helpers
# ----------------------------------------------------------------------------
def _round_up(v, m):
    return ((v + m - 1) // m) * m


def _pad2d(x, rows, cols):
    r, c = x.shape
    return jnp.pad(x, ((0, rows - r), (0, cols - c)))


def _pick_tile(dim, candidates=(512, 256, 128)):
    """Largest MXU-friendly tile that evenly divides a 128-padded dim."""
    for c in candidates:
        if dim >= c and dim % c == 0:
            return c
    return dim


# ----------------------------------------------------------------------------
# Pallas kernel 1: tiled matmul  out = A @ B  (optionally emitting BN partial
# statistics of the result per row-tile).
#   A: (M, K) streamed as (tm, tk) tiles,  B: (K, F) resident in VMEM.
# ----------------------------------------------------------------------------
def _matmul_kernel(a_ref, b_ref, o_ref, acc_ref, *, tk: int):
    k = pl.program_id(1)

    @pl.when(k == 0)
    def _init():
        acc_ref[...] = jnp.zeros_like(acc_ref)

    start = pl.multiple_of(k * tk, tk)
    acc_ref[...] += jnp.dot(a_ref[...], b_ref[pl.ds(start, tk), :],
                            preferred_element_type=jnp.float32)

    @pl.when(k == pl.num_programs(1) - 1)
    def _done():
        o_ref[...] = acc_ref[...].astype(o_ref.dtype)


def _matmul_stats_kernel(a_ref, b_ref, o_ref, stats_ref, acc_ref, *, tk: int):
    k = pl.program_id(1)

    @pl.when(k == 0)
    def _init():
        acc_ref[...] = jnp.zeros_like(acc_ref)

    start = pl.multiple_of(k * tk, tk)
    acc_ref[...] += jnp.dot(a_ref[...], b_ref[pl.ds(start, tk), :],
                            preferred_element_type=jnp.float32)

    @pl.when(k == pl.num_programs(1) - 1)
    def _done():
        h = acc_ref[...]
        o_ref[...] = h.astype(o_ref.dtype)
        # per-row-tile partial statistics for BatchNorm (f32, exact from acc)
        stats_ref[...] = jnp.concatenate(
            [jnp.sum(h, axis=0, keepdims=True),
             jnp.sum(h * h, axis=0, keepdims=True)], axis=0)


def _tiled_matmul(a, b, *, out_dtype, emit_stats):
    m, kdim = a.shape
    kdim2, f = b.shape
    assert kdim == kdim2
    tm = _pick_tile(m)
    tk = _pick_tile(kdim)
    grid = (m // tm, kdim // tk)

    in_specs = [
        pl.BlockSpec((tm, tk), lambda i, k: (i, k)),   # streamed A tiles
        pl.BlockSpec((kdim, f), lambda i, k: (0, 0)),  # B resident (DMA'd once)
    ]
    out_spec = pl.BlockSpec((tm, f), lambda i, k: (i, 0))
    scratch = [pltpu.VMEM((tm, f), jnp.float32)]
    cparams = pltpu.CompilerParams(
        dimension_semantics=("parallel", "arbitrary"))

    if emit_stats:
        kernel = functools.partial(_matmul_stats_kernel, tk=tk)
        return pl.pallas_call(
            kernel,
            out_shape=(jax.ShapeDtypeStruct((m, f), out_dtype),
                       jax.ShapeDtypeStruct((m // tm, 2, f), jnp.float32)),
            grid=grid,
            in_specs=in_specs,
            out_specs=(out_spec,
                       pl.BlockSpec((None, 2, f), lambda i, k: (i, 0, 0))),
            scratch_shapes=scratch,
            compiler_params=cparams,
        )(a, b)

    kernel = functools.partial(_matmul_kernel, tk=tk)
    return pl.pallas_call(
        kernel,
        out_shape=jax.ShapeDtypeStruct((m, f), out_dtype),
        grid=grid,
        in_specs=in_specs,
        out_specs=out_spec,
        scratch_shapes=scratch,
        compiler_params=cparams,
    )(a, b)


# ----------------------------------------------------------------------------
# Pallas kernel 2: lane-dense BatchNorm normalize (+optional ReLU)
#   y = h * scale + shift   with scale/shift pre-folded per channel (f32 math)
# ----------------------------------------------------------------------------
def _bn_act_kernel(h_ref, scale_ref, shift_ref, o_ref, *, apply_act: bool):
    y = h_ref[...] * scale_ref[...] + shift_ref[...]
    if apply_act:
        y = jnp.maximum(y, 0.0)
    # TODO(synk): dropout follows in the PyTorch forward; here it runs in
    # inference mode (identity). A training-mode variant would use
    # pltpu.prng_seed + pltpu.prng_random_bits to build the Bernoulli mask.
    o_ref[...] = y.astype(o_ref.dtype)


def _bn_act(h, scale, shift, *, apply_act, out_dtype):
    m, f = h.shape
    tm = _pick_tile(m)
    kernel = functools.partial(_bn_act_kernel, apply_act=apply_act)
    return pl.pallas_call(
        kernel,
        out_shape=jax.ShapeDtypeStruct((m, f), out_dtype),
        grid=(m // tm,),
        in_specs=[pl.BlockSpec((tm, f), lambda i: (i, 0)),
                  pl.BlockSpec((1, f), lambda i: (0, 0)),
                  pl.BlockSpec((1, f), lambda i: (0, 0))],
        out_specs=pl.BlockSpec((tm, f), lambda i: (i, 0)),
        compiler_params=pltpu.CompilerParams(
            dimension_semantics=("parallel",)),
    )(h, scale.reshape(1, f), shift.reshape(1, f))


# ----------------------------------------------------------------------------
# one Diff_Encoder layer:  GCNConv -> BatchNorm1d -> (ReLU) -> dropout(id)
# ----------------------------------------------------------------------------
def diff_layer(a_bf16, x_pad, w, gamma, beta, *, n_real, apply_act, out_dtype,
               eps=1e-5):
    fin_pad = x_pad.shape[1]
    fout = w.shape[1]
    fout_pad = _round_up(fout, 128)

    w_pad = _pad2d(w, fin_pad, fout_pad).astype(jnp.bfloat16)
    gamma_pad = jnp.pad(gamma, (0, fout_pad - fout), constant_values=1.0)
    beta_pad = jnp.pad(beta, (0, fout_pad - fout))

    # Choose matmul association so the O(N^2) matmul contracts against the
    # smaller feature dimension.
    if fin_pad <= fout_pad:
        ax = _tiled_matmul(a_bf16, x_pad, out_dtype=jnp.bfloat16,
                           emit_stats=False)                     # (Npad, Fin)
        h, stats = _tiled_matmul(ax, w_pad, out_dtype=jnp.float32,
                                 emit_stats=True)                # (Npad, Fout)
    else:
        xw = _tiled_matmul(x_pad, w_pad, out_dtype=jnp.bfloat16,
                           emit_stats=False)                     # (Npad, Fout)
        h, stats = _tiled_matmul(a_bf16, xw, out_dtype=jnp.float32,
                                 emit_stats=True)                # (Npad, Fout)

    # Finalize BatchNorm statistics over the REAL node count (padded rows of H
    # are exactly zero, so they contribute nothing to sum / sumsq).
    # TODO(synk): running-mean/var buffers are not updated (inference-style
    # state handling); normalization itself uses batch statistics as in
    # PyTorch training mode.
    total_sum = jnp.sum(stats[:, 0, :], axis=0)
    total_sq = jnp.sum(stats[:, 1, :], axis=0)
    mean = total_sum / n_real
    var = jnp.maximum(total_sq / n_real - mean * mean, 0.0)
    scale = gamma_pad * jax.lax.rsqrt(var + eps)
    shift = beta_pad - mean * scale

    return _bn_act(h, scale, shift, apply_act=apply_act, out_dtype=out_dtype)


# ----------------------------------------------------------------------------
# Diff_Encoder wrapper (glue in plain JAX)
# ----------------------------------------------------------------------------
def init_diff_encoder_params(key, input_dim, hidden, layer_num):
    """Glorot-uniform weights; BatchNorm gamma=1 / beta=0 (fresh module)."""
    params = []
    dims = [input_dim] + [hidden] * layer_num
    for i in range(layer_num):
        key, sub = jax.random.split(key)
        fan_in, fan_out = dims[i], dims[i + 1]
        limit = jnp.sqrt(6.0 / (fan_in + fan_out))
        w = jax.random.uniform(sub, (fan_in, fan_out), jnp.float32, -limit, limit)
        params.append(dict(
            w=w,
            gamma=jnp.ones((fan_out,), jnp.float32),
            beta=jnp.zeros((fan_out,), jnp.float32),
        ))
    return params


def dense_adjacency(edge_index, edge_weight, num_nodes):
    """A[i, j] = weight of edge j -> i (PyG source_to_target flow)."""
    src, dst = edge_index[0], edge_index[1]
    if edge_weight is None:
        edge_weight = jnp.ones(src.shape, jnp.float32)
    a = jnp.zeros((num_nodes, num_nodes), jnp.float32)
    return a.at[dst, src].add(edge_weight)


def diff_encoder_forward(x, edge_index, edge_weight, params,
                         *, last_activation=True):
    n_real, fin = x.shape
    n_pad = _round_up(n_real, 128)
    fin_pad = _round_up(fin, 128)

    # Dense adjacency is built once and streamed as bf16 across all layers.
    a = dense_adjacency(edge_index, edge_weight, n_real)
    a_bf16 = _pad2d(a, n_pad, n_pad).astype(jnp.bfloat16)
    h = _pad2d(x, n_pad, fin_pad).astype(jnp.bfloat16)

    layer_num = len(params)
    for i, p in enumerate(params):
        apply_act = not (i == layer_num - 1 and not last_activation)
        out_dtype = jnp.bfloat16 if i < layer_num - 1 else jnp.float32
        h = diff_layer(a_bf16, h, p["w"], p["gamma"], p["beta"],
                       n_real=n_real, apply_act=apply_act, out_dtype=out_dtype)

    fout = params[-1]["w"].shape[1]
    return h[:n_real, :fout]


# ----------------------------------------------------------------------------
# pure-JAX f32 reference (for a sanity check)
# ----------------------------------------------------------------------------
def reference_forward(x, a, params, *, last_activation=True, eps=1e-5):
    h = x
    layer_num = len(params)
    for i, p in enumerate(params):
        h = a @ (h @ p["w"])
        mean = jnp.mean(h, axis=0)
        var = jnp.mean((h - mean) ** 2, axis=0)
        h = (h - mean) * jax.lax.rsqrt(var + eps) * p["gamma"] + p["beta"]
        if not (i == layer_num - 1 and not last_activation):
            h = jnp.maximum(h, 0.0)
    return h


# ----------------------------------------------------------------------------
if __name__ == "__main__":
    key = jax.random.PRNGKey(0)

    num_nodes = 16
    input_dim = 8
    hidden = 32
    layer_num = 2
    num_edges = 40

    k_x, k_src, k_dst, k_w, k_p = jax.random.split(key, 5)
    x = jax.random.normal(k_x, (num_nodes, input_dim), jnp.float32)
    src = jax.random.randint(k_src, (num_edges,), 0, num_nodes)
    dst = jax.random.randint(k_dst, (num_edges,), 0, num_nodes)
    edge_index = jnp.stack([src, dst], axis=0)
    edge_weight = jax.random.uniform(k_w, (num_edges,), jnp.float32, 0.1, 1.0)

    params = init_diff_encoder_params(k_p, input_dim, hidden, layer_num)

    out = diff_encoder_forward(x, edge_index, edge_weight, params,
                               last_activation=True)
    out = jax.block_until_ready(out)

    assert out.shape == (num_nodes, hidden)
    assert bool(jnp.all(jnp.isfinite(out)))

    a_f32 = dense_adjacency(edge_index, edge_weight, num_nodes)
    ref = reference_forward(x, a_f32, params, last_activation=True)
    assert bool(jnp.allclose(out, ref, atol=0.1, rtol=0.1)), \
        float(jnp.max(jnp.abs(out - ref)))

    print("KERNEL_OK")
</pallas_src>

<mosaic_0001>
module attributes {stable_mosaic.version = 11 : i64} {
  func.func @_matmul_kernel(%arg0: i32, %arg1: i32, %arg2: memref<128x128xbf16, #tpu.memory_space<vmem>>, %arg3: memref<128x128xbf16, #tpu.memory_space<vmem>>, %arg4: memref<128x128xbf16, #tpu.memory_space<vmem>>, %arg5: memref<128x128xf32, #tpu.memory_space<vmem>>) attributes {dimension_semantics = [#tpu.dimension_semantics<parallel>, #tpu.dimension_semantics<arbitrary>], iteration_bounds = array<i64: 1, 1>, scalar_prefetch = 0 : i64, scratch_operands = 1 : i64, tpu.core_type = #tpu.core_type<tc>, window_params = [{transform_indices = @transform_0, window_bounds = array<i64: 128, 128>}, {pipeline_mode = #tpu.pipeline_mode<synchronous>, transform_indices = @transform_1, window_bounds = array<i64: 128, 128>}, {transform_indices = @transform_2, window_bounds = array<i64: 128, 128>}]} {
    %c0_i32 = arith.constant 0 : i32
    %0 = arith.cmpi eq, %arg1, %c0_i32 : i32
    %1 = arith.extui %0 : i1 to i32
    %c0_i32_0 = arith.constant 0 : i32
    %2 = arith.cmpi ne, %1, %c0_i32_0 : i32
    scf.if %2 {
      %cst_9 = arith.constant 0.000000e+00 : f32
      %15 = vector.broadcast %cst_9 : f32 to vector<128x128xf32>
      %c0_10 = arith.constant 0 : index
      %c0_11 = arith.constant 0 : index
      %16 = vector.load %arg5[%c0_10, %c0_11] : memref<128x128xf32, #tpu.memory_space<vmem>>, vector<128x128xf32>
      tpu.vector_store %arg5[%c0_10, %c0_11], %15 {strides = array<i32>} : memref<128x128xf32, #tpu.memory_space<vmem>>, vector<128x128xf32>,
    } else {
    }
    %c128_i32 = arith.constant 128 : i32
    %3 = arith.muli %arg1, %c128_i32 : i32
    %4 = tpu.assume_multiple %3, 128 : i32
    %c0 = arith.constant 0 : index
    %c0_1 = arith.constant 0 : index
    %5 = vector.load %arg5[%c0, %c0_1] : memref<128x128xf32, #tpu.memory_space<vmem>>, vector<128x128xf32>
    %c0_2 = arith.constant 0 : index
    %c0_3 = arith.constant 0 : index
    %6 = vector.load %arg2[%c0_2, %c0_3] : memref<128x128xbf16, #tpu.memory_space<vmem>>, vector<128x128xbf16>
    %7 = arith.index_cast %4 : i32 to index
    %c0_4 = arith.constant 0 : index
    %8 = vector.load %arg3[%7, %c0_4] : memref<128x128xbf16, #tpu.memory_space<vmem>>, vector<128x128xbf16>
    %cst = arith.constant dense<0.000000e+00> : vector<128x128xf32>
    %9 = tpu.matmul %6, %8, %cst {dimension_numbers = #tpu.dot_dimension_numbers<[1], [0], [0], [1], [0, 0, 1, 1], [], []>} : vector<128x128xbf16>, vector<128x128xbf16>, vector<128x128xf32> -> vector<128x128xf32>
    %10 = arith.addf %5, %9 : vector<128x128xf32>
    %c0_5 = arith.constant 0 : index
    %c0_6 = arith.constant 0 : index
    %11 = vector.load %arg5[%c0_5, %c0_6] : memref<128x128xf32, #tpu.memory_space<vmem>>, vector<128x128xf32>
    tpu.vector_store %arg5[%c0_5, %c0_6], %10 {strides = array<i32>} : memref<128x128xf32, #tpu.memory_space<vmem>>, vector<128x128xf32>,
    %c0_i32_7 = arith.constant 0 : i32
    %12 = arith.cmpi eq, %arg1, %c0_i32_7 : i32
    %13 = arith.extui %12 : i1 to i32
    %c0_i32_8 = arith.constant 0 : i32
    %14 = arith.cmpi ne, %13, %c0_i32_8 : i32
    scf.if %14 {
      %c0_9 = arith.constant 0 : index
      %c0_10 = arith.constant 0 : index
      %15 = vector.load %arg5[%c0_9, %c0_10] : memref<128x128xf32, #tpu.memory_space<vmem>>, vector<128x128xf32>
      %16 = arith.truncf %15 : vector<128x128xf32> to vector<128x128xbf16>
      %c0_11 = arith.constant 0 : index
      %c0_12 = arith.constant 0 : index
      %17 = vector.load %arg4[%c0_11, %c0_12] : memref<128x128xbf16, #tpu.memory_space<vmem>>, vector<128x128xbf16>
      tpu.vector_store %arg4[%c0_11, %c0_12], %16 {strides = array<i32>} : memref<128x128xbf16, #tpu.memory_space<vmem>>, vector<128x128xbf16>,
    } else {
    }
    return
  }
  func.func @transform_0(%arg0: i32, %arg1: i32) -> (i32, i32) {
    %c0_i32 = arith.constant 0 : i32
    return %arg0, %arg1 : i32, i32
  }
  func.func @transform_1(%arg0: i32, %arg1: i32) -> (i32, i32) {
    %c0_i32 = arith.constant 0 : i32
    %c0_i32_0 = arith.constant 0 : i32
    %c0_i32_1 = arith.constant 0 : i32
    return %c0_i32, %c0_i32_0 : i32, i32
  }
  func.func @transform_2(%arg0: i32, %arg1: i32) -> (i32, i32) {
    %c0_i32 = arith.constant 0 : i32
    %c0_i32_0 = arith.constant 0 : i32
    return %arg0, %c0_i32 : i32, i32
  }
}

</mosaic_0001>

<llo_original>
// kernel: tpu_custom_call.1
$region0: #{tpu_custom_call.1}
  #allocation0 [shape = 'u32[]', space=smem, size = 0x4, offset = 0x4, fixed_abs, tag = 'smem constant byte address 0x4 - core index']
  #allocation1 [shape = 'u32[72,128]{1,0:T(1,128)}', space=vmem, size = 0x9000, scoped, tag = 'internal scratch']
  #allocation2 [shape = 'f32[128,128]{1,0:T(8,128)}', space=vmem, size = 0x10000, scoped, tag = 'scratch operand']
  %s0 = inlined_call_operand.hbm [shape: bf16[128,128], index: 0, kind: input, shape index: {}]
  %s1 = inlined_call_operand.hbm [shape: bf16[128,128], index: 1, kind: input, shape index: {}]
  %s2 = inlined_call_operand.hbm [shape: bf16[128,128], index: 2, kind: output, shape index: {}]
  %s3 = sld [smem:[#allocation0]]
  $region34: #{tpu_custom_call.1} parent=0
    _
  %s5 = ssub.s32 1, %s3
  %s6 = scalar_select 0, %s5, %s3
  $region1: #{tpu_custom_call.1} parent=0
    #allocation3 [shape = 'u8[32768]{0}', space=vmem, size = 0x8000, scoped, tag = 'input window, operand 0, single buffered']
    #allocation4 [shape = 's32[1]{0}', space=sflag, size = 0x4, scoped, tag = 'scoped memory for tpu_custom_call.1']
    #allocation5 [shape = 's32[1]{0}', space=sflag, size = 0x4, scoped, tag = 'scoped memory for tpu_custom_call.1']
    #allocation6 [shape = 'u8[32768]{0}', space=vmem, size = 0x8000, scoped, tag = 'input window, operand 1, single buffered']
    #allocation7 [shape = 's32[1]{0}', space=sflag, size = 0x4, scoped, tag = 'scoped memory for tpu_custom_call.1']
    #allocation8 [shape = 'u8[32768]{0}', space=vmem, size = 0x8000, scoped, tag = 'output window, operand 0, single buffered']
    %7 = vsyncpa [#allocation4], 0
    %8 = vsyncpa [#allocation7], 0
    %9 = vsyncpa [#allocation5], 0
    // Predicated region
    $region2: #{tpu_custom_call.1} parent=1 // pred_check
      _
    $region3: #{tpu_custom_call.1} parent=1 // pred_check_branch
      %11 = sbr.rel (0) target = $region5
    $region4: #{tpu_custom_call.1} parent=1 // pred_region
      %13 = vsyncadd [#allocation4], 0
      %s14 = sshll.u32 %s0, 4
      %s15 = int_to_ptr.hbm [resolvable:$true] %s14
      %s16 = sshll.u32 [#allocation3], 4
      %s17 = int_to_ptr.vmem [resolvable:$true] %s16
      %22 = dma.hbm_to_vmem [thread:$0]  %s15, 1024, %s17, [#allocation4], 64, 64, 4
    $region5: #{tpu_custom_call.1} parent=1 // pred_fallthru
      _
    // Predicated region
    $region6: #{tpu_custom_call.1} parent=1 // pred_check
      _
    $region7: #{tpu_custom_call.1} parent=1 // pred_check_branch
      %24 = sbr.rel (0) target = $region9
    $region8: #{tpu_custom_call.1} parent=1 // pred_region
      %26 = vsyncadd [#allocation7], 0
      %s27 = sshll.u32 %s1, 4
      %s28 = int_to_ptr.hbm [resolvable:$true] %s27
      %s29 = sshll.u32 [#allocation6], 4
      %s30 = int_to_ptr.vmem [resolvable:$true] %s29
      %35 = dma.hbm_to_vmem [thread:$0]  %s28, 1024, %s30, [#allocation7], 64, 64, 4
    $region9: #{tpu_custom_call.1} parent=1 // pred_fallthru
      _
    // Predicated region
    $region10: #{tpu_custom_call.1} parent=1 // pred_check
      _
    $region11: #{tpu_custom_call.1} parent=1 // pred_check_branch
      %37 = sbr.rel (0) target = $region13
    $region12: #{tpu_custom_call.1} parent=1 // pred_region
      %39 = dma.done [#allocation4], 1024
    $region13: #{tpu_custom_call.1} parent=1 // pred_fallthru
      _
    // Predicated region
    $region14: #{tpu_custom_call.1} parent=1 // pred_check
      _
    $region15: #{tpu_custom_call.1} parent=1 // pred_check_branch
      %41 = sbr.rel (0) target = $region17
    $region16: #{tpu_custom_call.1} parent=1 // pred_region
      %43 = dma.done [#allocation7], 1024
    $region17: #{tpu_custom_call.1} parent=1 // pred_fallthru
      _
    %p44 = scmp.eq.s32.totalorder 0, 0
    // Predicated region
    $region18: #{tpu_custom_call.1} parent=1 // pred_check
      %p45 = pneg %p44
    $region19: #{tpu_custom_call.1} parent=1 // pred_check_branch
      %47 = sbr.rel (%p45) target = $region21
    $region20: #{tpu_custom_call.1} parent=1 // pred_region
      %48 = vst [vmem:[#allocation2] sm:$0xff] 0.0
      %49 = vst [vmem:[#allocation2 + $0x8] sm:$0xff] 0.0
      %50 = vst [vmem:[#allocation2 + $0x10] sm:$0xff] 0.0
      %51 = vst [vmem:[#allocation2 + $0x18] sm:$0xff] 0.0
      %52 = vst [vmem:[#allocation2 + $0x20] sm:$0xff] 0.0
      %53 = vst [vmem:[#allocation2 + $0x28] sm:$0xff] 0.0
      %54 = vst [vmem:[#allocation2 + $0x30] sm:$0xff] 0.0
      %55 = vst [vmem:[#allocation2 + $0x38] sm:$0xff] 0.0
      %56 = vst [vmem:[#allocation2 + $0x40] sm:$0xff] 0.0
      %57 = vst [vmem:[#allocation2 + $0x48] sm:$0xff] 0.0
      %58 = vst [vmem:[#allocation2 + $0x50] sm:$0xff] 0.0
      %59 = vst [vmem:[#allocation2 + $0x58] sm:$0xff] 0.0
      %60 = vst [vmem:[#allocation2 + $0x60] sm:$0xff] 0.0
      %61 = vst [vmem:[#allocation2 + $0x68] sm:$0xff] 0.0
      %62 = vst [vmem:[#allocation2 + $0x70] sm:$0xff] 0.0
      %63 = vst [vmem:[#allocation2 + $0x78] sm:$0xff] 0.0
    $region21: #{tpu_custom_call.1} parent=1 // pred_fallthru
      _
    %s64 = smul.u32 0, 128
    %v65 = vld [vmem:[#allocation2] sm:$0xff]
    %v66 = vld [vmem:[#allocation2 + $0x8] sm:$0xff]
    %v67 = vld [vmem:[#allocation2 + $0x10] sm:$0xff]
    %v68 = vld [vmem:[#allocation2 + $0x18] sm:$0xff]
    %v69 = vld [vmem:[#allocation2 + $0x20] sm:$0xff]
    %v70 = vld [vmem:[#allocation2 + $0x28] sm:$0xff]
    %v71 = vld [vmem:[#allocation2 + $0x30] sm:$0xff]
    %v72 = vld [vmem:[#allocation2 + $0x38] sm:$0xff]
    %v73 = vld [vmem:[#allocation2 + $0x40] sm:$0xff]
    %v74 = vld [vmem:[#allocation2 + $0x48] sm:$0xff]
    %v75 = vld [vmem:[#allocation2 + $0x50] sm:$0xff]
    %v76 = vld [vmem:[#allocation2 + $0x58] sm:$0xff]
    %v77 = vld [vmem:[#allocation2 + $0x60] sm:$0xff]
    %v78 = vld [vmem:[#allocation2 + $0x68] sm:$0xff]
    %v79 = vld [vmem:[#allocation2 + $0x70] sm:$0xff]
    %v80 = vld [vmem:[#allocation2 + $0x78] sm:$0xff]
    %v81 = vld [vmem:[#allocation3] sm:$0xf]
    %v82 = vld [vmem:[#allocation3 + $0x4] sm:$0xf]
    %v83 = vld [vmem:[#allocation3 + $0x8] sm:$0xf]
    %v84 = vld [vmem:[#allocation3 + $0xc] sm:$0xf]
    %v85 = vld [vmem:[#allocation3 + $0x10] sm:$0xf]
    %v86 = vld [vmem:[#allocation3 + $0x14] sm:$0xf]
    %v87 = vld [vmem:[#allocation3 + $0x18] sm:$0xf]
    %v88 = vld [vmem:[#allocation3 + $0x1c] sm:$0xf]
    %v89 = vld [vmem:[#allocation3 + $0x20] sm:$0xf]
    %v90 = vld [vmem:[#allocation3 + $0x24] sm:$0xf]
    %v91 = vld [vmem:[#allocation3 + $0x28] sm:$0xf]
    %v92 = vld [vmem:[#allocation3 + $0x2c] sm:$0xf]
    %v93 = vld [vmem:[#allocation3 + $0x30] sm:$0xf]
    %v94 = vld [vmem:[#allocation3 + $0x34] sm:$0xf]
    %v95 = vld [vmem:[#allocation3 + $0x38] sm:$0xf]
    %v96 = vld [vmem:[#allocation3 + $0x3c] sm:$0xf]
    %s97 = sshra.s32 %s64, 3
    %s98 = sand.u32 %s64, 7
    %s99 = smul.addr %s97, 4
    %s100 = scalar_lea.vmem [#allocation6], %s99
    %v101 = vld [vmem:[%s100] sm:$0xf]
    %v102 = vld [vmem:[%s100 + $0x4] sm:$0xf]
    %v103 = vld [vmem:[%s100 + $0x8] sm:$0xf]
    %v104 = vld [vmem:[%s100 + $0xc] sm:$0xf]
    %v105 = vld [vmem:[%s100 + $0x10] sm:$0xf]
    %v106 = vld [vmem:[%s100 + $0x14] sm:$0xf]
    %v107 = vld [vmem:[%s100 + $0x18] sm:$0xf]
    %v108 = vld [vmem:[%s100 + $0x1c] sm:$0xf]
    %v109 = vld [vmem:[%s100 + $0x20] sm:$0xf]
    %v110 = vld [vmem:[%s100 + $0x24] sm:$0xf]
    %v111 = vld [vmem:[%s100 + $0x28] sm:$0xf]
    %v112 = vld [vmem:[%s100 + $0x2c] sm:$0xf]
    %v113 = vld [vmem:[%s100 + $0x30] sm:$0xf]
    %v114 = vld [vmem:[%s100 + $0x34] sm:$0xf]
    %v115 = vld [vmem:[%s100 + $0x38] sm:$0xf]
    %v116 = vld [vmem:[%s100 + $0x3c] sm:$0xf]
    %v133 = vunpack.c.l.b16 %v81
    %v134 = vunpack.c.l.b16 %v82
    %v135 = vunpack.c.l.b16 %v83
    %v136 = vunpack.c.l.b16 %v84
    %v137 = vunpack.c.l.b16 %v85
    %v138 = vunpack.c.l.b16 %v86
    %v139 = vunpack.c.l.b16 %v87
    %v140 = vunpack.c.l.b16 %v88
    %v141 = vunpack.c.l.b16 %v89
    %v142 = vunpack.c.l.b16 %v90
    %v143 = vunpack.c.l.b16 %v91
    %v144 = vunpack.c.l.b16 %v92
    %v145 = vunpack.c.l.b16 %v93
    %v146 = vunpack.c.l.b16 %v94
    %v147 = vunpack.c.l.b16 %v95
    %v148 = vunpack.c.l.b16 %v96
    %v149 = vpack.c.b16 %v134, %v133
    %v150 = vpack.c.b16 %v136, %v135
    %v151 = vpack.c.b16 %v138, %v137
    %v152 = vpack.c.b16 %v140, %v139
    %v153 = vpack.c.b16 %v142, %v141
    %v154 = vpack.c.b16 %v144, %v143
    %v155 = vpack.c.b16 %v146, %v145
    %v156 = vpack.c.b16 %v148, %v147
    %v181 = vunpack.c.l.b16 %v101
    %v182 = vunpack.c.l.b16 %v102
    %v183 = vunpack.c.l.b16 %v103
    %v184 = vunpack.c.l.b16 %v104
    %v185 = vunpack.c.l.b16 %v105
    %v186 = vunpack.c.l.b16 %v106
    %v187 = vunpack.c.l.b16 %v107
    %v188 = vunpack.c.l.b16 %v108
    %v189 = vunpack.c.l.b16 %v109
    %v190 = vunpack.c.l.b16 %v110
    %v191 = vunpack.c.l.b16 %v111
    %v192 = vunpack.c.l.b16 %v112
    %v193 = vunpack.c.l.b16 %v113
    %v194 = vunpack.c.l.b16 %v114
    %v195 = vunpack.c.l.b16 %v115
    %v196 = vunpack.c.l.b16 %v116
    %v197 = vpack.c.b16 %v182, %v181
    %v198 = vpack.c.b16 %v184, %v183
    %v199 = vpack.c.b16 %v186, %v185
    %v200 = vpack.c.b16 %v188, %v187
    %v201 = vpack.c.b16 %v190, %v189
    %v202 = vpack.c.b16 %v192, %v191
    %v203 = vpack.c.b16 %v194, %v193
    %v204 = vpack.c.b16 %v196, %v195
    %213 = vmatpush.bf16.msra.mxu0 %v204
    %214 = vmatpush.bf16.msra.mxu0 %v203
    %215 = vmatpush.bf16.msra.mxu0 %v202
    %216 = vmatpush.bf16.msra.mxu0 %v201
    %217 = vmatpush.bf16.msra.mxu0 %v200
    %218 = vmatpush.bf16.msra.mxu0 %v199
    %219 = vmatpush.bf16.msra.mxu0 %v198
    %220 = vmatpush.bf16.msra.mxu0 %v197
    %221 = vmatmul.bf16.gmra.mxu0 %v149
    %v222 = vpop.f32.mrf.mxu0
    %v223 = vadd.f32 0.0, %v222
    %v224 = vpop.f32.mrf.mxu0
    %v225 = vadd.f32 0.0, %v224
    %226 = vmatmul.bf16.gmra.mxu0 %v150
    %v227 = vpop.f32.mrf.mxu0
    %v228 = vadd.f32 0.0, %v227
    %v229 = vpop.f32.mrf.mxu0
    %v230 = vadd.f32 0.0, %v229
    %231 = vmatmul.bf16.gmra.mxu0 %v151
    %v232 = vpop.f32.mrf.mxu0
    %v233 = vadd.f32 0.0, %v232
    %v234 = vpop.f32.mrf.mxu0
    %v235 = vadd.f32 0.0, %v234
    %236 = vmatmul.bf16.gmra.mxu0 %v152
    %v237 = vpop.f32.mrf.mxu0
    %v238 = vadd.f32 0.0, %v237
    %v239 = vpop.f32.mrf.mxu0
    %v240 = vadd.f32 0.0, %v239
    %241 = vmatmul.bf16.gmra.mxu0 %v153
    %v242 = vpop.f32.mrf.mxu0
    %v243 = vadd.f32 0.0, %v242
    %v244 = vpop.f32.mrf.mxu0
    %v245 = vadd.f32 0.0, %v244
    %246 = vmatmul.bf16.gmra.mxu0 %v154
    %v247 = vpop.f32.mrf.mxu0
    %v248 = vadd.f32 0.0, %v247
    %v249 = vpop.f32.mrf.mxu0
    %v250 = vadd.f32 0.0, %v249
    %251 = vmatmul.bf16.gmra.mxu0 %v155
    %v252 = vpop.f32.mrf.mxu0
    %v253 = vadd.f32 0.0, %v252
    %v254 = vpop.f32.mrf.mxu0
    %v255 = vadd.f32 0.0, %v254
    %256 = vmatmul.bf16.gmra.mxu0 %v156
    %v257 = vpop.f32.mrf.mxu0
    %v258 = vadd.f32 0.0, %v257
    %v259 = vpop.f32.mrf.mxu0
    %v260 = vadd.f32 0.0, %v259
    %261 = vdwg.mxu0
    %v262 = vadd.f32 %v65, %v223
    %v263 = vadd.f32 %v66, %v225
    %v264 = vadd.f32 %v67, %v228
    %v265 = vadd.f32 %v68, %v230
    %v266 = vadd.f32 %v69, %v233
    %v267 = vadd.f32 %v70, %v235
    %v268 = vadd.f32 %v71, %v238
    %v269 = vadd.f32 %v72, %v240
    %v270 = vadd.f32 %v73, %v243
    %v271 = vadd.f32 %v74, %v245
    %v272 = vadd.f32 %v75, %v248
    %v273 = vadd.f32 %v76, %v250
    %v274 = vadd.f32 %v77, %v253
    %v275 = vadd.f32 %v78, %v255
    %v276 = vadd.f32 %v79, %v258
    %v277 = vadd.f32 %v80, %v260
    %278 = vst [vmem:[#allocation2] sm:$0xff] %v262
    %279 = vst [vmem:[#allocation2 + $0x8] sm:$0xff] %v263
    %280 = vst [vmem:[#allocation2 + $0x10] sm:$0xff] %v264
    %281 = vst [vmem:[#allocation2 + $0x18] sm:$0xff] %v265
    %282 = vst [vmem:[#allocation2 + $0x20] sm:$0xff] %v266
    %283 = vst [vmem:[#allocation2 + $0x28] sm:$0xff] %v267
    %284 = vst [vmem:[#allocation2 + $0x30] sm:$0xff] %v268
    %285 = vst [vmem:[#allocation2 + $0x38] sm:$0xff] %v269
    %286 = vst [vmem:[#allocation2 + $0x40] sm:$0xff] %v270
    %287 = vst [vmem:[#allocation2 + $0x48] sm:$0xff] %v271
    %288 = vst [vmem:[#allocation2 + $0x50] sm:$0xff] %v272
    %289 = vst [vmem:[#allocation2 + $0x58] sm:$0xff] %v273
    %290 = vst [vmem:[#allocation2 + $0x60] sm:$0xff] %v274
    %291 = vst [vmem:[#allocation2 + $0x68] sm:$0xff] %v275
    %292 = vst [vmem:[#allocation2 + $0x70] sm:$0xff] %v276
    %293 = vst [vmem:[#allocation2 + $0x78] sm:$0xff] %v277
    // Predicated region
    $region22: #{tpu_custom_call.1} parent=1 // pred_check
      %p294 = pneg %p44
    $region23: #{tpu_custom_call.1} parent=1 // pred_check_branch
      %296 = sbr.rel (%p294) target = $region25
    $region24: #{tpu_custom_call.1} parent=1 // pred_region
      %v297 = vld [vmem:[#allocation2] sm:$0xff]
      %v298 = vld [vmem:[#allocation2 + $0x8] sm:$0xff]
      %v299 = vld [vmem:[#allocation2 + $0x10] sm:$0xff]
      %v300 = vld [vmem:[#allocation2 + $0x18] sm:$0xff]
      %v301 = vld [vmem:[#allocation2 + $0x20] sm:$0xff]
      %v302 = vld [vmem:[#allocation2 + $0x28] sm:$0xff]
      %v303 = vld [vmem:[#allocation2 + $0x30] sm:$0xff]
      %v304 = vld [vmem:[#allocation2 + $0x38] sm:$0xff]
      %v305 = vld [vmem:[#allocation2 + $0x40] sm:$0xff]
      %v306 = vld [vmem:[#allocation2 + $0x48] sm:$0xff]
      %v307 = vld [vmem:[#allocation2 + $0x50] sm:$0xff]
      %v308 = vld [vmem:[#allocation2 + $0x58] sm:$0xff]
      %v309 = vld [vmem:[#allocation2 + $0x60] sm:$0xff]
      %v310 = vld [vmem:[#allocation2 + $0x68] sm:$0xff]
      %v311 = vld [vmem:[#allocation2 + $0x70] sm:$0xff]
      %v312 = vld [vmem:[#allocation2 + $0x78] sm:$0xff]
      %v313 = vpack.c.bf16 %v297, %v297
      %v314 = vpack.c.bf16 %v298, %v298
      %v315 = vpack.c.bf16 %v299, %v299
      %v316 = vpack.c.bf16 %v300, %v300
      %v317 = vpack.c.bf16 %v301, %v301
      %v318 = vpack.c.bf16 %v302, %v302
      %v319 = vpack.c.bf16 %v303, %v303
      %v320 = vpack.c.bf16 %v304, %v304
      %v321 = vpack.c.bf16 %v305, %v305
      %v322 = vpack.c.bf16 %v306, %v306
      %v323 = vpack.c.bf16 %v307, %v307
      %v324 = vpack.c.bf16 %v308, %v308
      %v325 = vpack.c.bf16 %v309, %v309
      %v326 = vpack.c.bf16 %v310, %v310
      %v327 = vpack.c.bf16 %v311, %v311
      %v328 = vpack.c.bf16 %v312, %v312
      %329 = vst [vmem:[#allocation8] sm:$0xf] %v313
      %330 = vst [vmem:[#allocation8 + $0x4] sm:$0xf] %v314
      %331 = vst [vmem:[#allocation8 + $0x8] sm:$0xf] %v315
      %332 = vst [vmem:[#allocation8 + $0xc] sm:$0xf] %v316
      %333 = vst [vmem:[#allocation8 + $0x10] sm:$0xf] %v317
      %334 = vst [vmem:[#allocation8 + $0x14] sm:$0xf] %v318
      %335 = vst [vmem:[#allocation8 + $0x18] sm:$0xf] %v319
      %336 = vst [vmem:[#allocation8 + $0x1c] sm:$0xf] %v320
      %337 = vst [vmem:[#allocation8 + $0x20] sm:$0xf] %v321
      %338 = vst [vmem:[#allocation8 + $0x24] sm:$0xf] %v322
      %339 = vst [vmem:[#allocation8 + $0x28] sm:$0xf] %v323
      %340 = vst [vmem:[#allocation8 + $0x2c] sm:$0xf] %v324
      %341 = vst [vmem:[#allocation8 + $0x30] sm:$0xf] %v325
      %342 = vst [vmem:[#allocation8 + $0x34] sm:$0xf] %v326
      %343 = vst [vmem:[#allocation8 + $0x38] sm:$0xf] %v327
      %344 = vst [vmem:[#allocation8 + $0x3c] sm:$0xf] %v328
    $region25: #{tpu_custom_call.1} parent=1 // pred_fallthru
      _
    // Predicated region
    $region26: #{tpu_custom_call.1} parent=1 // pred_check
      _
    $region27: #{tpu_custom_call.1} parent=1 // pred_check_branch
      %346 = sbr.rel (0) target = $region29
    $region28: #{tpu_custom_call.1} parent=1 // pred_region
      %348 = vsyncadd [#allocation5], 0
      %s349 = sshll.u32 [#allocation8], 4
      %s350 = int_to_ptr.vmem [resolvable:$true] %s349
      %s351 = sshll.u32 %s2, 4
      %s352 = int_to_ptr.hbm [resolvable:$true] %s351
      %357 = dma.vmem_to_hbm [thread:$0]  %s350, 1024, %s352, [#allocation5], 64, 64, 4
    $region29: #{tpu_custom_call.1} parent=1 // pred_fallthru
      _
    // Predicated region
    $region30: #{tpu_custom_call.1} parent=1 // pred_check
      _
    $region31: #{tpu_custom_call.1} parent=1 // pred_check_branch
      %359 = sbr.rel (0) target = $region33
    $region32: #{tpu_custom_call.1} parent=1 // pred_region
      %361 = dma.done [#allocation5], 1024
    $region33: #{tpu_custom_call.1} parent=1 // pred_fallthru
      _
    %362 = vsyncpa [#allocation4], 1
    %363 = vsyncpa [#allocation7], 1
    %364 = vsyncpa [#allocation5], 1

</llo_original>
